<compile_context>
chip_gen: v7x
topology: tpu7x:2x2x1
jax: 0.10.0
libtpu: 0.0.40
codegen_flags: <defaults>
</compile_context>

<pallas_src>
import math

import jax
import jax.numpy as jnp
from jax.experimental import pallas as pl
from jax.experimental.pallas import tpu as pltpu

MAX_Z = 100        # Zmax (elements up to Fermium)
Z_PAD = 128        # padded table rows (MXU/lane friendly, catches OOB z)
NUM_FEATURES = 128 # feature dimension (lane-friendly)
N_CONFIG = 20      # number of electron-configuration descriptors
TILE_N = 128       # atoms per grid step (sublane aligned, small VMEM footprint)


def nuclear_embedding_kernel(z_ref, elem_ref, cfg_ref, w_ref, out_ref):
    """
    z_ref    : VMEM [TN, 1]      int32 atomic numbers for this tile
    elem_ref : VMEM [Z_PAD, F]   element embedding (zero-padded rows >= MAX_Z)
    cfg_ref  : VMEM [Z_PAD, C]   electron configuration (zero-padded)
    w_ref    : VMEM [C, F]       config_linear.weight^T (Linear has no bias)
    out_ref  : VMEM [TN, F]      gathered embeddings for this tile
    """
    z_rows = elem_ref.shape[0]
    tn = out_ref.shape[0]

    # Embedding table on the MXU: [Z_PAD, C] x [C, F] + [Z_PAD, F].
    # Tiny (~0.3 MFLOP) -> recomputed per tile so the atom axis stays parallel.
    table = elem_ref[...] + jnp.dot(
        cfg_ref[...], w_ref[...], preferred_element_type=jnp.float32
    )

    # One-hot gather on the MXU: out = onehot(z) @ table.
    # Exact 0/1 multipliers in f32 reproduce the row gather bit-exactly.
    # Out-of-range z (negative, >= Z_PAD) yields an all-zero one-hot row.
    z = z_ref[...]                                              # [TN, 1] int32
    iota = jax.lax.broadcasted_iota(jnp.int32, (tn, z_rows), 1) # [TN, Z_PAD]
    onehot = (iota == z).astype(jnp.float32)
    out_ref[...] = jnp.dot(onehot, table, preferred_element_type=jnp.float32)


def prepare_nuclear_embedding_params(element_embedding, electron_config, linear_weight):
    """One-time parameter prep (hoisted out of the per-call hot path):
    zero-pad Zmax -> Z_PAD rows and pre-transpose the Linear weight."""
    max_z, num_features = element_embedding.shape
    n_config = electron_config.shape[1]
    elem_pad = (
        jnp.zeros((Z_PAD, num_features), jnp.float32)
        .at[:max_z].set(element_embedding.astype(jnp.float32))
    )
    cfg_pad = (
        jnp.zeros((Z_PAD, n_config), jnp.float32)
        .at[:max_z].set(electron_config.astype(jnp.float32))
    )
    w_t = jnp.asarray(linear_weight, jnp.float32).T            # [C, F]
    return elem_pad, cfg_pad, w_t


def nuclear_embedding(atom_numbers, elem_pad, cfg_pad, w_t):
    """
    atom_numbers : int   [N]
    elem_pad     : f32   [Z_PAD, F]   (from prepare_nuclear_embedding_params)
    cfg_pad      : f32   [Z_PAD, C]
    w_t          : f32   [C, F]
    returns      : f32   [N, F]
    """
    n = atom_numbers.shape[0]
    z_rows, num_features = elem_pad.shape
    n_config = cfg_pad.shape[1]

    n_tiles = pl.cdiv(n, TILE_N)
    n_padded = n_tiles * TILE_N
    # Pad atom count to a multiple of TILE_N so every output store is a full
    # unmasked (8,128) tile; padded tail rows are sliced off below.
    z2d = (
        jnp.zeros((n_padded, 1), jnp.int32)
        .at[:n, 0].set(atom_numbers.astype(jnp.int32))
    )

    out = pl.pallas_call(
        nuclear_embedding_kernel,
        out_shape=jax.ShapeDtypeStruct((n_padded, num_features), jnp.float32),
        grid_spec=pltpu.PrefetchScalarGridSpec(
            num_scalar_prefetch=0,
            grid=(n_tiles,),
            in_specs=[
                pl.BlockSpec((TILE_N, 1), lambda i: (i, 0)),            # z tile
                pl.BlockSpec((z_rows, num_features), lambda i: (0, 0)), # elem
                pl.BlockSpec((z_rows, n_config), lambda i: (0, 0)),     # cfg
                pl.BlockSpec((n_config, num_features), lambda i: (0, 0)),  # W^T
            ],
            out_specs=pl.BlockSpec((TILE_N, num_features), lambda i: (i, 0)),
        ),
        compiler_params=pltpu.CompilerParams(
            dimension_semantics=("parallel",)   # atom tiles split across TCs on v7x
        ),
    )(z2d, elem_pad, cfg_pad, w_t)

    return out[:n]


if __name__ == "__main__":
    key = jax.random.PRNGKey(0)
    k_cfg, k_emb, k_w, k_z = jax.random.split(key, 4)

    n_atoms = 8

    # Synthetic "electron_config" buffer, normalized per column by its max
    # (mirrors `electron_config / np.max(electron_config, axis=0)`).
    ec = jax.random.uniform(k_cfg, (MAX_Z, N_CONFIG), dtype=jnp.float32) + 1e-3
    ec = ec / jnp.max(ec, axis=0)

    # Deterministic parameter init (zero_init=False branch style so the
    # output is non-trivial): uniform(-sqrt(3), sqrt(3)) element embedding,
    # small random config_linear weight (stand-in for orthogonal init).
    elem = jax.random.uniform(
        k_emb, (MAX_Z, NUM_FEATURES), dtype=jnp.float32,
        minval=-math.sqrt(3.0), maxval=math.sqrt(3.0),
    )
    w = 0.1 * jax.random.normal(k_w, (NUM_FEATURES, N_CONFIG), dtype=jnp.float32)

    atom_numbers = jax.random.randint(k_z, (n_atoms,), 1, MAX_Z, dtype=jnp.int32)

    # One-time parameter prep (padding + weight transpose), then the kernel.
    elem_pad, cfg_pad, w_t = prepare_nuclear_embedding_params(elem, ec, w)
    out = nuclear_embedding(atom_numbers, elem_pad, cfg_pad, w_t)
    out = jax.block_until_ready(out)

    # Pure-JAX reference for correctness (original, unpadded semantics).
    ref_table = elem + ec @ w.T
    ref = ref_table[atom_numbers]
    assert out.shape == (n_atoms, NUM_FEATURES)
    assert jnp.allclose(out, ref, atol=1e-5, rtol=1e-5), "mismatch vs reference"

    print("KERNEL_OK")
</pallas_src>

<mosaic_0001>
module attributes {stable_mosaic.version = 11 : i64} {
  func.func @nuclear_embedding_kernel(%arg0: i32, %arg1: memref<128x1xi32, #tpu.memory_space<vmem>>, %arg2: memref<128x128xf32, #tpu.memory_space<vmem>>, %arg3: memref<128x20xf32, #tpu.memory_space<vmem>>, %arg4: memref<20x128xf32, #tpu.memory_space<vmem>>, %arg5: memref<128x128xf32, #tpu.memory_space<vmem>>) attributes {dimension_semantics = [#tpu.dimension_semantics<parallel>], iteration_bounds = array<i64: 1>, scalar_prefetch = 0 : i64, scratch_operands = 0 : i64, tpu.core_type = #tpu.core_type<tc>, window_params = [{transform_indices = @transform_0, window_bounds = array<i64: 128, 1>}, {pipeline_mode = #tpu.pipeline_mode<synchronous>, transform_indices = @transform_1, window_bounds = array<i64: 128, 128>}, {pipeline_mode = #tpu.pipeline_mode<synchronous>, transform_indices = @transform_2, window_bounds = array<i64: 128, 20>}, {pipeline_mode = #tpu.pipeline_mode<synchronous>, transform_indices = @transform_3, window_bounds = array<i64: 20, 128>}, {transform_indices = @transform_4, window_bounds = array<i64: 128, 128>}]} {
    %c0 = arith.constant 0 : index
    %c0_0 = arith.constant 0 : index
    %0 = vector.load %arg2[%c0, %c0_0] : memref<128x128xf32, #tpu.memory_space<vmem>>, vector<128x128xf32>
    %c0_1 = arith.constant 0 : index
    %c0_2 = arith.constant 0 : index
    %1 = vector.load %arg3[%c0_1, %c0_2] : memref<128x20xf32, #tpu.memory_space<vmem>>, vector<128x20xf32>
    %c0_3 = arith.constant 0 : index
    %c0_4 = arith.constant 0 : index
    %2 = vector.load %arg4[%c0_3, %c0_4] : memref<20x128xf32, #tpu.memory_space<vmem>>, vector<20x128xf32>
    %cst = arith.constant dense<0.000000e+00> : vector<128x128xf32>
    %3 = tpu.matmul %1, %2, %cst {dimension_numbers = #tpu.dot_dimension_numbers<[1], [0], [0], [1], [0, 0, 1, 1], [], []>} : vector<128x20xf32>, vector<20x128xf32>, vector<128x128xf32> -> vector<128x128xf32>
    %4 = arith.addf %0, %3 : vector<128x128xf32>
    %c0_5 = arith.constant 0 : index
    %c0_6 = arith.constant 0 : index
    %5 = vector.load %arg1[%c0_5, %c0_6] : memref<128x1xi32, #tpu.memory_space<vmem>>, vector<128x1xi32>
    %6 = tpu.iota {dimensions = array<i32: 1>} : vector<128x128xi32>
    %7 = vector.broadcast %5 : vector<128x1xi32> to vector<128x128xi32>
    %8 = arith.cmpi eq, %6, %7 : vector<128x128xi32>
    %9 = arith.extui %8 : vector<128x128xi1> to vector<128x128xi32>
    %10 = arith.sitofp %9 : vector<128x128xi32> to vector<128x128xf32>
    %cst_7 = arith.constant dense<0.000000e+00> : vector<128x128xf32>
    %11 = tpu.matmul %10, %4, %cst_7 {dimension_numbers = #tpu.dot_dimension_numbers<[1], [0], [0], [1], [0, 0, 1, 1], [], []>} : vector<128x128xf32>, vector<128x128xf32>, vector<128x128xf32> -> vector<128x128xf32>
    %c0_8 = arith.constant 0 : index
    %c0_9 = arith.constant 0 : index
    %12 = vector.load %arg5[%c0_8, %c0_9] : memref<128x128xf32, #tpu.memory_space<vmem>>, vector<128x128xf32>
    tpu.vector_store %arg5[%c0_8, %c0_9], %11 {strides = array<i32>} : memref<128x128xf32, #tpu.memory_space<vmem>>, vector<128x128xf32>,
    return
  }
  func.func @transform_0(%arg0: i32) -> (i32, i32) {
    %c0_i32 = arith.constant 0 : i32
    %c0_i32_0 = arith.constant 0 : i32
    return %arg0, %c0_i32 : i32, i32
  }
  func.func @transform_1(%arg0: i32) -> (i32, i32) {
    %c0_i32 = arith.constant 0 : i32
    %c0_i32_0 = arith.constant 0 : i32
    %c0_i32_1 = arith.constant 0 : i32
    return %c0_i32, %c0_i32_0 : i32, i32
  }
  func.func @transform_2(%arg0: i32) -> (i32, i32) {
    %c0_i32 = arith.constant 0 : i32
    %c0_i32_0 = arith.constant 0 : i32
    %c0_i32_1 = arith.constant 0 : i32
    return %c0_i32, %c0_i32_0 : i32, i32
  }
  func.func @transform_3(%arg0: i32) -> (i32, i32) {
    %c0_i32 = arith.constant 0 : i32
    %c0_i32_0 = arith.constant 0 : i32
    %c0_i32_1 = arith.constant 0 : i32
    return %c0_i32, %c0_i32_0 : i32, i32
  }
  func.func @transform_4(%arg0: i32) -> (i32, i32) {
    %c0_i32 = arith.constant 0 : i32
    %c0_i32_0 = arith.constant 0 : i32
    return %arg0, %c0_i32 : i32, i32
  }
}

</mosaic_0001>

<llo_original>
// kernel: tpu_custom_call.1
$region0: #{tpu_custom_call.1}
  #allocation0 [shape = 'u32[]', space=smem, size = 0x4, offset = 0x4, fixed_abs, tag = 'smem constant byte address 0x4 - core index']
  #allocation1 [shape = 'u32[144,128]{1,0:T(1,128)}', space=vmem, size = 0x12000, scoped, tag = 'internal scratch']
  %s0 = inlined_call_operand.vmem [shape: s32[128,1], index: 0, kind: input, shape index: {}]
  %s1 = inlined_call_operand.vmem [shape: f32[128,128], index: 1, kind: input, shape index: {}]
  %s2 = inlined_call_operand.vmem [shape: f32[128,20], index: 2, kind: input, shape index: {}]
  %s3 = inlined_call_operand.vmem [shape: f32[20,128], index: 3, kind: input, shape index: {}]
  %s4 = inlined_call_operand.hbm [shape: f32[128,128], index: 4, kind: output, shape index: {}]
  %s5 = sld [smem:[#allocation0]]
  $region26: #{tpu_custom_call.1} parent=0
    _
  %s7 = ssub.s32 1, %s5
  %s8 = scalar_select 0, %s7, %s5
  $region1: #{tpu_custom_call.1} parent=0
    #allocation2 [shape = 'u8[65536]{0}', space=vmem, size = 0x10000, scoped, tag = 'output window, operand 0, single buffered']
    #allocation3 [shape = 's32[1]{0}', space=sflag, size = 0x4, scoped, tag = 'scoped memory for tpu_custom_call.1']
    %9 = vsyncpa [#allocation3], 0
    // Predicated region
    $region2: #{tpu_custom_call.1} parent=1 // pred_check
      _
    $region3: #{tpu_custom_call.1} parent=1 // pred_check_branch
      %11 = sbr.rel (0) target = $region5
    $region4: #{tpu_custom_call.1} parent=1 // pred_region
      _
    $region5: #{tpu_custom_call.1} parent=1 // pred_fallthru
      _
    // Predicated region
    $region6: #{tpu_custom_call.1} parent=1 // pred_check
      _
    $region7: #{tpu_custom_call.1} parent=1 // pred_check_branch
      %13 = sbr.rel (0) target = $region9
    $region8: #{tpu_custom_call.1} parent=1 // pred_region
      _
    $region9: #{tpu_custom_call.1} parent=1 // pred_fallthru
      _
    // Predicated region
    $region10: #{tpu_custom_call.1} parent=1 // pred_check
      _
    $region11: #{tpu_custom_call.1} parent=1 // pred_check_branch
      %15 = sbr.rel (0) target = $region13
    $region12: #{tpu_custom_call.1} parent=1 // pred_region
      _
    $region13: #{tpu_custom_call.1} parent=1 // pred_fallthru
      _
    // Predicated region
    $region14: #{tpu_custom_call.1} parent=1 // pred_check
      _
    $region15: #{tpu_custom_call.1} parent=1 // pred_check_branch
      %17 = sbr.rel (0) target = $region17
    $region16: #{tpu_custom_call.1} parent=1 // pred_region
      _
    $region17: #{tpu_custom_call.1} parent=1 // pred_fallthru
      _
    %v18 = vld [vmem:[%s1] sm:$0xff]
    %v19 = vld [vmem:[%s1 + $0x8] sm:$0xff]
    %v20 = vld [vmem:[%s1 + $0x10] sm:$0xff]
    %v21 = vld [vmem:[%s1 + $0x18] sm:$0xff]
    %v22 = vld [vmem:[%s1 + $0x20] sm:$0xff]
    %v23 = vld [vmem:[%s1 + $0x28] sm:$0xff]
    %v24 = vld [vmem:[%s1 + $0x30] sm:$0xff]
    %v25 = vld [vmem:[%s1 + $0x38] sm:$0xff]
    %v26 = vld [vmem:[%s1 + $0x40] sm:$0xff]
    %v27 = vld [vmem:[%s1 + $0x48] sm:$0xff]
    %v28 = vld [vmem:[%s1 + $0x50] sm:$0xff]
    %v29 = vld [vmem:[%s1 + $0x58] sm:$0xff]
    %v30 = vld [vmem:[%s1 + $0x60] sm:$0xff]
    %v31 = vld [vmem:[%s1 + $0x68] sm:$0xff]
    %v32 = vld [vmem:[%s1 + $0x70] sm:$0xff]
    %v33 = vld [vmem:[%s1 + $0x78] sm:$0xff]
    %v34 = vld [vmem:[%s2] sm:$0xff]
    %v35 = vld [vmem:[%s2 + $0x8] sm:$0xff]
    %v36 = vld [vmem:[%s2 + $0x10] sm:$0xff]
    %v37 = vld [vmem:[%s2 + $0x18] sm:$0xff]
    %v38 = vld [vmem:[%s2 + $0x20] sm:$0xff]
    %v39 = vld [vmem:[%s2 + $0x28] sm:$0xff]
    %v40 = vld [vmem:[%s2 + $0x30] sm:$0xff]
    %v41 = vld [vmem:[%s2 + $0x38] sm:$0xff]
    %v42 = vld [vmem:[%s2 + $0x40] sm:$0xff]
    %v43 = vld [vmem:[%s2 + $0x48] sm:$0xff]
    %v44 = vld [vmem:[%s2 + $0x50] sm:$0xff]
    %v45 = vld [vmem:[%s2 + $0x58] sm:$0xff]
    %v46 = vld [vmem:[%s2 + $0x60] sm:$0xff]
    %v47 = vld [vmem:[%s2 + $0x68] sm:$0xff]
    %v48 = vld [vmem:[%s2 + $0x70] sm:$0xff]
    %v49 = vld [vmem:[%s2 + $0x78] sm:$0xff]
    %v50 = vld [vmem:[%s3] sm:$0xff]
    %v51 = vld [vmem:[%s3 + $0x8] sm:$0xff]
    %v52 = vld [vmem:[%s3 + $0x10] sm:$0xf]
    %vm53 = vcmask 162816
    %v55 = vsel %vm53, %v34, 0
    %v58 = vsel %vm53, %v35, 0
    %v61 = vsel %vm53, %v36, 0
    %v64 = vsel %vm53, %v37, 0
    %v67 = vsel %vm53, %v38, 0
    %v70 = vsel %vm53, %v39, 0
    %v73 = vsel %vm53, %v40, 0
    %v76 = vsel %vm53, %v41, 0
    %v79 = vsel %vm53, %v42, 0
    %v82 = vsel %vm53, %v43, 0
    %v85 = vsel %vm53, %v44, 0
    %v88 = vsel %vm53, %v45, 0
    %v91 = vsel %vm53, %v46, 0
    %v94 = vsel %vm53, %v47, 0
    %v97 = vsel %vm53, %v48, 0
    %v100 = vsel %vm53, %v49, 0
    %vm102 = vcmask 1043456
    %v104 = vsel %vm102, %v52, 0
    %106 = vmatprep.subr.mxu0 0.0
    %107 = vmatpush1.msra.mxu0 %v50
    %108 = vmatprep.subr.mxu0 0.0
    %109 = vmatpush1.msra.mxu0 %v51
    %110 = vmatprep.subr.mxu0 0.0
    %111 = vmatpush1.msra.mxu0 %v104
    %112 = vmatprep.subr.mxu0 0.0
    %113 = vmatpush1.msra.mxu0 0.0
    %114 = vmatprep.subr.mxu0 0.0
    %115 = vmatpush1.msra.mxu0 0.0
    %116 = vmatprep.subr.mxu0 0.0
    %117 = vmatpush1.msra.mxu0 0.0
    %118 = vmatprep.subr.mxu0 0.0
    %119 = vmatpush1.msra.mxu0 0.0
    %120 = vmatprep.subr.mxu0 0.0
    %121 = vmatpush1.msra.mxu0 0.0
    %122 = vmatprep.subr.mxu0 0.0
    %123 = vmatpush1.msra.mxu0 0.0
    %124 = vmatprep.subr.mxu0 0.0
    %125 = vmatpush1.msra.mxu0 0.0
    %126 = vmatprep.subr.mxu0 0.0
    %127 = vmatpush1.msra.mxu0 0.0
    %128 = vmatprep.subr.mxu0 0.0
    %129 = vmatpush1.msra.mxu0 0.0
    %130 = vmatprep.subr.mxu0 0.0
    %131 = vmatpush1.msra.mxu0 0.0
    %132 = vmatprep.subr.mxu0 0.0
    %133 = vmatpush1.msra.mxu0 0.0
    %134 = vmatprep.subr.mxu0 0.0
    %135 = vmatpush1.msra.mxu0 0.0
    %136 = vmatprep.subr.mxu0 0.0
    %137 = vmatpush1.msra.mxu0 0.0
    %138 = vmatprep.subr.mxu0 0.0
    %139 = vmatpush1.msra.mxu0 0.0
    %140 = vmatprep.subr.mxu0 0.0
    %141 = vmatpush1.msra.mxu0 0.0
    %142 = vmatprep.subr.mxu0 0.0
    %143 = vmatpush1.msra.mxu0 0.0
    %144 = vmatprep.subr.mxu0 0.0
    %145 = vmatpush1.msra.mxu0 0.0
    %146 = vmatprep.subr.mxu0 0.0
    %147 = vmatpush1.msra.mxu0 0.0
    %148 = vmatprep.subr.mxu0 0.0
    %149 = vmatpush1.msra.mxu0 0.0
    %150 = vmatprep.subr.mxu0 0.0
    %151 = vmatpush1.msra.mxu0 0.0
    %152 = vmatprep.subr.mxu0 0.0
    %153 = vmatpush1.msra.mxu0 0.0
    %154 = vmatprep.subr.mxu0 0.0
    %155 = vmatpush1.msra.mxu0 0.0
    %156 = vmatprep.subr.mxu0 0.0
    %157 = vmatpush1.msra.mxu0 0.0
    %158 = vmatprep.subr.mxu0 0.0
    %159 = vmatpush1.msra.mxu0 0.0
    %160 = vmatprep.subr.mxu0 0.0
    %161 = vmatpush1.msra.mxu0 0.0
    %162 = vmatprep.subr.mxu0 0.0
    %163 = vmatpush1.msra.mxu0 0.0
    %164 = vmatprep.subr.mxu0 0.0
    %165 = vmatpush1.msra.mxu0 0.0
    %166 = vmatprep.subr.mxu0 0.0
    %167 = vmatpush1.msra.mxu0 0.0
    %168 = vmatprep.subr.mxu0 0.0
    %169 = vmatpush1.msra.mxu0 0.0
    %170 = vmatprep.mubr.f32.mxu0 0.0
    %171 = vmatmul.mubr.f32.gmra.mrb[0].mxu0 %v55
    %v172 = vpop.f32.mrb[0].mxu0
    %v173 = vadd.f32 0.0, %v172
    %v174 = vpop.f32.mrb[0].mxu0
    %175 = vmatprep.mubr.f32.mxu0 0.0
    %176 = vmatmul.mubr.f32.gmra.mrb[0].mxu0 %v58
    %v177 = vpop.f32.mrb[0].mxu0
    %v178 = vadd.f32 0.0, %v177
    %v179 = vpop.f32.mrb[0].mxu0
    %180 = vmatprep.mubr.f32.mxu0 0.0
    %181 = vmatmul.mubr.f32.gmra.mrb[0].mxu0 %v61
    %v182 = vpop.f32.mrb[0].mxu0
    %v183 = vadd.f32 0.0, %v182
    %v184 = vpop.f32.mrb[0].mxu0
    %185 = vmatprep.mubr.f32.mxu0 0.0
    %186 = vmatmul.mubr.f32.gmra.mrb[0].mxu0 %v64
    %v187 = vpop.f32.mrb[0].mxu0
    %v188 = vadd.f32 0.0, %v187
    %v189 = vpop.f32.mrb[0].mxu0
    %190 = vmatprep.mubr.f32.mxu0 0.0
    %191 = vmatmul.mubr.f32.gmra.mrb[0].mxu0 %v67
    %v192 = vpop.f32.mrb[0].mxu0
    %v193 = vadd.f32 0.0, %v192
    %v194 = vpop.f32.mrb[0].mxu0
    %195 = vmatprep.mubr.f32.mxu0 0.0
    %196 = vmatmul.mubr.f32.gmra.mrb[0].mxu0 %v70
    %v197 = vpop.f32.mrb[0].mxu0
    %v198 = vadd.f32 0.0, %v197
    %v199 = vpop.f32.mrb[0].mxu0
    %200 = vmatprep.mubr.f32.mxu0 0.0
    %201 = vmatmul.mubr.f32.gmra.mrb[0].mxu0 %v73
    %v202 = vpop.f32.mrb[0].mxu0
    %v203 = vadd.f32 0.0, %v202
    %v204 = vpop.f32.mrb[0].mxu0
    %205 = vmatprep.mubr.f32.mxu0 0.0
    %206 = vmatmul.mubr.f32.gmra.mrb[0].mxu0 %v76
    %v207 = vpop.f32.mrb[0].mxu0
    %v208 = vadd.f32 0.0, %v207
    %v209 = vpop.f32.mrb[0].mxu0
    %210 = vmatprep.mubr.f32.mxu0 0.0
    %211 = vmatmul.mubr.f32.gmra.mrb[0].mxu0 %v79
    %v212 = vpop.f32.mrb[0].mxu0
    %v213 = vadd.f32 0.0, %v212
    %v214 = vpop.f32.mrb[0].mxu0
    %215 = vmatprep.mubr.f32.mxu0 0.0
    %216 = vmatmul.mubr.f32.gmra.mrb[0].mxu0 %v82
    %v217 = vpop.f32.mrb[0].mxu0
    %v218 = vadd.f32 0.0, %v217
    %v219 = vpop.f32.mrb[0].mxu0
    %220 = vmatprep.mubr.f32.mxu0 0.0
    %221 = vmatmul.mubr.f32.gmra.mrb[0].mxu0 %v85
    %v222 = vpop.f32.mrb[0].mxu0
    %v223 = vadd.f32 0.0, %v222
    %v224 = vpop.f32.mrb[0].mxu0
    %225 = vmatprep.mubr.f32.mxu0 0.0
    %226 = vmatmul.mubr.f32.gmra.mrb[0].mxu0 %v88
    %v227 = vpop.f32.mrb[0].mxu0
    %v228 = vadd.f32 0.0, %v227
    %v229 = vpop.f32.mrb[0].mxu0
    %230 = vmatprep.mubr.f32.mxu0 0.0
    %231 = vmatmul.mubr.f32.gmra.mrb[0].mxu0 %v91
    %v232 = vpop.f32.mrb[0].mxu0
    %v233 = vadd.f32 0.0, %v232
    %v234 = vpop.f32.mrb[0].mxu0
    %235 = vmatprep.mubr.f32.mxu0 0.0
    %236 = vmatmul.mubr.f32.gmra.mrb[0].mxu0 %v94
    %v237 = vpop.f32.mrb[0].mxu0
    %v238 = vadd.f32 0.0, %v237
    %v239 = vpop.f32.mrb[0].mxu0
    %240 = vmatprep.mubr.f32.mxu0 0.0
    %241 = vmatmul.mubr.f32.gmra.mrb[0].mxu0 %v97
    %v242 = vpop.f32.mrb[0].mxu0
    %v243 = vadd.f32 0.0, %v242
    %v244 = vpop.f32.mrb[0].mxu0
    %245 = vmatprep.mubr.f32.mxu0 0.0
    %246 = vmatmul.mubr.f32.gmra.mrb[0].mxu0 %v100
    %v247 = vpop.f32.mrb[0].mxu0
    %v248 = vadd.f32 0.0, %v247
    %v249 = vpop.f32.mrb[0].mxu0
    %250 = vdwg.mxu0
    %v251 = vadd.f32 %v18, %v173
    %v252 = vadd.f32 %v19, %v178
    %v253 = vadd.f32 %v20, %v183
    %v254 = vadd.f32 %v21, %v188
    %v255 = vadd.f32 %v22, %v193
    %v256 = vadd.f32 %v23, %v198
    %v257 = vadd.f32 %v24, %v203
    %v258 = vadd.f32 %v25, %v208
    %v259 = vadd.f32 %v26, %v213
    %v260 = vadd.f32 %v27, %v218
    %v261 = vadd.f32 %v28, %v223
    %v262 = vadd.f32 %v29, %v228
    %v263 = vadd.f32 %v30, %v233
    %v264 = vadd.f32 %v31, %v238
    %v265 = vadd.f32 %v32, %v243
    %v266 = vadd.f32 %v33, %v248
    %v267 = vld [vmem:[%s0] sm:$0xff]
    %v268 = vld [vmem:[%s0 + $0x8] sm:$0xff]
    %v269 = vld [vmem:[%s0 + $0x10] sm:$0xff]
    %v270 = vld [vmem:[%s0 + $0x18] sm:$0xff]
    %v271 = vld [vmem:[%s0 + $0x20] sm:$0xff]
    %v272 = vld [vmem:[%s0 + $0x28] sm:$0xff]
    %v273 = vld [vmem:[%s0 + $0x30] sm:$0xff]
    %v274 = vld [vmem:[%s0 + $0x38] sm:$0xff]
    %v275 = vld [vmem:[%s0 + $0x40] sm:$0xff]
    %v276 = vld [vmem:[%s0 + $0x48] sm:$0xff]
    %v277 = vld [vmem:[%s0 + $0x50] sm:$0xff]
    %v278 = vld [vmem:[%s0 + $0x58] sm:$0xff]
    %v279 = vld [vmem:[%s0 + $0x60] sm:$0xff]
    %v280 = vld [vmem:[%s0 + $0x68] sm:$0xff]
    %v281 = vld [vmem:[%s0 + $0x70] sm:$0xff]
    %v282 = vld [vmem:[%s0 + $0x78] sm:$0xff]
    %v283 = vlaneseq
    %v284 = vand.u32 %v283, 127
    %285 = vset.pattern.permute.xlu0 0
    %286 = vperm.xlu0 %285, %v267
    %v287 = vpop.permute.xlu0 %286
    %288 = vset.pattern.permute.xlu0 0
    %289 = vperm.xlu0 %288, %v268
    %v290 = vpop.permute.xlu0 %289
    %291 = vset.pattern.permute.xlu0 0
    %292 = vperm.xlu0 %291, %v269
    %v293 = vpop.permute.xlu0 %292
    %294 = vset.pattern.permute.xlu0 0
    %295 = vperm.xlu0 %294, %v270
    %v296 = vpop.permute.xlu0 %295
    %297 = vset.pattern.permute.xlu0 0
    %298 = vperm.xlu0 %297, %v271
    %v299 = vpop.permute.xlu0 %298
    %300 = vset.pattern.permute.xlu0 0
    %301 = vperm.xlu0 %300, %v272
    %v302 = vpop.permute.xlu0 %301
    %303 = vset.pattern.permute.xlu0 0
    %304 = vperm.xlu0 %303, %v273
    %v305 = vpop.permute.xlu0 %304
    %306 = vset.pattern.permute.xlu0 0
    %307 = vperm.xlu0 %306, %v274
    %v308 = vpop.permute.xlu0 %307
    %309 = vset.pattern.permute.xlu0 0
    %310 = vperm.xlu0 %309, %v275
    %v311 = vpop.permute.xlu0 %310
    %312 = vset.pattern.permute.xlu0 0
    %313 = vperm.xlu0 %312, %v276
    %v314 = vpop.permute.xlu0 %313
    %315 = vset.pattern.permute.xlu0 0
    %316 = vperm.xlu0 %315, %v277
    %v317 = vpop.permute.xlu0 %316
    %318 = vset.pattern.permute.xlu0 0
    %319 = vperm.xlu0 %318, %v278
    %v320 = vpop.permute.xlu0 %319
    %321 = vset.pattern.permute.xlu0 0
    %322 = vperm.xlu0 %321, %v279
    %v323 = vpop.permute.xlu0 %322
    %324 = vset.pattern.permute.xlu0 0
    %325 = vperm.xlu0 %324, %v280
    %v326 = vpop.permute.xlu0 %325
    %327 = vset.pattern.permute.xlu0 0
    %328 = vperm.xlu0 %327, %v281
    %v329 = vpop.permute.xlu0 %328
    %330 = vset.pattern.permute.xlu0 0
    %331 = vperm.xlu0 %330, %v282
    %v332 = vpop.permute.xlu0 %331
    %vm333 = vcmp.eq.s32.totalorder %v284, %v287
    %vm334 = vcmp.eq.s32.totalorder %v284, %v290
    %vm335 = vcmp.eq.s32.totalorder %v284, %v293
    %vm336 = vcmp.eq.s32.totalorder %v284, %v296
    %vm337 = vcmp.eq.s32.totalorder %v284, %v299
    %vm338 = vcmp.eq.s32.totalorder %v284, %v302
    %vm339 = vcmp.eq.s32.totalorder %v284, %v305
    %vm340 = vcmp.eq.s32.totalorder %v284, %v308
    %vm341 = vcmp.eq.s32.totalorder %v284, %v311
    %vm342 = vcmp.eq.s32.totalorder %v284, %v314
    %vm343 = vcmp.eq.s32.totalorder %v284, %v317
    %vm344 = vcmp.eq.s32.totalorder %v284, %v320
    %vm345 = vcmp.eq.s32.totalorder %v284, %v323
    %vm346 = vcmp.eq.s32.totalorder %v284, %v326
    %vm347 = vcmp.eq.s32.totalorder %v284, %v329
    %vm348 = vcmp.eq.s32.totalorder %v284, %v332
    %v349 = vsel %vm333, 1, 0
    %v350 = vsel %vm334, 1, 0
    %v351 = vsel %vm335, 1, 0
    %v352 = vsel %vm336, 1, 0
    %v353 = vsel %vm337, 1, 0
    %v354 = vsel %vm338, 1, 0
    %v355 = vsel %vm339, 1, 0
    %v356 = vsel %vm340, 1, 0
    %v357 = vsel %vm341, 1, 0
    %v358 = vsel %vm342, 1, 0
    %v359 = vsel %vm343, 1, 0
    %v360 = vsel %vm344, 1, 0
    %v361 = vsel %vm345, 1, 0
    %v362 = vsel %vm346, 1, 0
    %v363 = vsel %vm347, 1, 0
    %v364 = vsel %vm348, 1, 0
    %v365 = vcvt.s32.f32 %v349
    %v366 = vcvt.s32.f32 %v350
    %v367 = vcvt.s32.f32 %v351
    %v368 = vcvt.s32.f32 %v352
    %v369 = vcvt.s32.f32 %v353
    %v370 = vcvt.s32.f32 %v354
    %v371 = vcvt.s32.f32 %v355
    %v372 = vcvt.s32.f32 %v356
    %v373 = vcvt.s32.f32 %v357
    %v374 = vcvt.s32.f32 %v358
    %v375 = vcvt.s32.f32 %v359
    %v376 = vcvt.s32.f32 %v360
    %v377 = vcvt.s32.f32 %v361
    %v378 = vcvt.s32.f32 %v362
    %v379 = vcvt.s32.f32 %v363
    %v380 = vcvt.s32.f32 %v364
    %381 = vmatprep.subr.mxu0 0.0
    %382 = vmatpush1.msra.mxu0 %v251
    %383 = vmatprep.subr.mxu0 0.0
    %384 = vmatpush1.msra.mxu0 %v252
    %385 = vmatprep.subr.mxu0 0.0
    %386 = vmatpush1.msra.mxu0 %v253
    %387 = vmatprep.subr.mxu0 0.0
    %388 = vmatpush1.msra.mxu0 %v254
    %389 = vmatprep.subr.mxu0 0.0
    %390 = vmatpush1.msra.mxu0 %v255
    %391 = vmatprep.subr.mxu0 0.0
    %392 = vmatpush1.msra.mxu0 %v256
    %393 = vmatprep.subr.mxu0 0.0
    %394 = vmatpush1.msra.mxu0 %v257
    %395 = vmatprep.subr.mxu0 0.0
    %396 = vmatpush1.msra.mxu0 %v258
    %397 = vmatprep.subr.mxu0 0.0
    %398 = vmatpush1.msra.mxu0 %v259
    %399 = vmatprep.subr.mxu0 0.0
    %400 = vmatpush1.msra.mxu0 %v260
    %401 = vmatprep.subr.mxu0 0.0
    %402 = vmatpush1.msra.mxu0 %v261
    %403 = vmatprep.subr.mxu0 0.0
    %404 = vmatpush1.msra.mxu0 %v262
    %405 = vmatprep.subr.mxu0 0.0
    %406 = vmatpush1.msra.mxu0 %v263
    %407 = vmatprep.subr.mxu0 0.0
    %408 = vmatpush1.msra.mxu0 %v264
    %409 = vmatprep.subr.mxu0 0.0
    %410 = vmatpush1.msra.mxu0 %v265
    %411 = vmatprep.subr.mxu0 0.0
    %412 = vmatpush1.msra.mxu0 %v266
    %413 = vmatprep.subr.mxu0 0.0
    %414 = vmatpush1.msra.mxu0 0.0
    %415 = vmatprep.subr.mxu0 0.0
    %416 = vmatpush1.msra.mxu0 0.0
    %417 = vmatprep.subr.mxu0 0.0
    %418 = vmatpush1.msra.mxu0 0.0
    %419 = vmatprep.subr.mxu0 0.0
    %420 = vmatpush1.msra.mxu0 0.0
    %421 = vmatprep.subr.mxu0 0.0
    %422 = vmatpush1.msra.mxu0 0.0
    %423 = vmatprep.subr.mxu0 0.0
    %424 = vmatpush1.msra.mxu0 0.0
    %425 = vmatprep.subr.mxu0 0.0
    %426 = vmatpush1.msra.mxu0 0.0
    %427 = vmatprep.subr.mxu0 0.0
    %428 = vmatpush1.msra.mxu0 0.0
    %429 = vmatprep.subr.mxu0 0.0
    %430 = vmatpush1.msra.mxu0 0.0
    %431 = vmatprep.subr.mxu0 0.0
    %432 = vmatpush1.msra.mxu0 0.0
    %433 = vmatprep.subr.mxu0 0.0
    %434 = vmatpush1.msra.mxu0 0.0
    %435 = vmatprep.subr.mxu0 0.0
    %436 = vmatpush1.msra.mxu0 0.0
    %437 = vmatprep.subr.mxu0 0.0
    %438 = vmatpush1.msra.mxu0 0.0
    %439 = vmatprep.subr.mxu0 0.0
    %440 = vmatpush1.msra.mxu0 0.0
    %441 = vmatprep.subr.mxu0 0.0
    %442 = vmatpush1.msra.mxu0 0.0
    %443 = vmatprep.subr.mxu0 0.0
    %444 = vmatpush1.msra.mxu0 0.0
    %445 = vmatprep.mubr.f32.mxu0 0.0
    %446 = vmatmul.mubr.f32.gmra.mrb[0].mxu0 %v365
    %v447 = vpop.f32.mrb[0].mxu0
    %v448 = vadd.f32 0.0, %v447
    %v449 = vpop.f32.mrb[0].mxu0
    %450 = vmatprep.mubr.f32.mxu0 0.0
    %451 = vmatmul.mubr.f32.gmra.mrb[0].mxu0 %v366
    %v452 = vpop.f32.mrb[0].mxu0
    %v453 = vadd.f32 0.0, %v452
    %v454 = vpop.f32.mrb[0].mxu0
    %455 = vmatprep.mubr.f32.mxu0 0.0
    %456 = vmatmul.mubr.f32.gmra.mrb[0].mxu0 %v367
    %v457 = vpop.f32.mrb[0].mxu0
    %v458 = vadd.f32 0.0, %v457
    %v459 = vpop.f32.mrb[0].mxu0
    %460 = vmatprep.mubr.f32.mxu0 0.0
    %461 = vmatmul.mubr.f32.gmra.mrb[0].mxu0 %v368
    %v462 = vpop.f32.mrb[0].mxu0
    %v463 = vadd.f32 0.0, %v462
    %v464 = vpop.f32.mrb[0].mxu0
    %465 = vmatprep.mubr.f32.mxu0 0.0
    %466 = vmatmul.mubr.f32.gmra.mrb[0].mxu0 %v369
    %v467 = vpop.f32.mrb[0].mxu0
    %v468 = vadd.f32 0.0, %v467
    %v469 = vpop.f32.mrb[0].mxu0
    %470 = vmatprep.mubr.f32.mxu0 0.0
    %471 = vmatmul.mubr.f32.gmra.mrb[0].mxu0 %v370
    %v472 = vpop.f32.mrb[0].mxu0
    %v473 = vadd.f32 0.0, %v472
    %v474 = vpop.f32.mrb[0].mxu0
    %475 = vmatprep.mubr.f32.mxu0 0.0
    %476 = vmatmul.mubr.f32.gmra.mrb[0].mxu0 %v371
    %v477 = vpop.f32.mrb[0].mxu0
    %v478 = vadd.f32 0.0, %v477
    %v479 = vpop.f32.mrb[0].mxu0
    %480 = vmatprep.mubr.f32.mxu0 0.0
    %481 = vmatmul.mubr.f32.gmra.mrb[0].mxu0 %v372
    %v482 = vpop.f32.mrb[0].mxu0
    %v483 = vadd.f32 0.0, %v482
    %v484 = vpop.f32.mrb[0].mxu0
    %485 = vmatprep.mubr.f32.mxu0 0.0
    %486 = vmatmul.mubr.f32.gmra.mrb[0].mxu0 %v373
    %v487 = vpop.f32.mrb[0].mxu0
    %v488 = vadd.f32 0.0, %v487
    %v489 = vpop.f32.mrb[0].mxu0
    %490 = vmatprep.mubr.f32.mxu0 0.0
    %491 = vmatmul.mubr.f32.gmra.mrb[0].mxu0 %v374
    %v492 = vpop.f32.mrb[0].mxu0
    %v493 = vadd.f32 0.0, %v492
    %v494 = vpop.f32.mrb[0].mxu0
    %495 = vmatprep.mubr.f32.mxu0 0.0
    %496 = vmatmul.mubr.f32.gmra.mrb[0].mxu0 %v375
    %v497 = vpop.f32.mrb[0].mxu0
    %v498 = vadd.f32 0.0, %v497
    %v499 = vpop.f32.mrb[0].mxu0
    %500 = vmatprep.mubr.f32.mxu0 0.0
    %501 = vmatmul.mubr.f32.gmra.mrb[0].mxu0 %v376
    %v502 = vpop.f32.mrb[0].mxu0
    %v503 = vadd.f32 0.0, %v502
    %v504 = vpop.f32.mrb[0].mxu0
    %505 = vmatprep.mubr.f32.mxu0 0.0
    %506 = vmatmul.mubr.f32.gmra.mrb[0].mxu0 %v377
    %v507 = vpop.f32.mrb[0].mxu0
    %v508 = vadd.f32 0.0, %v507
    %v509 = vpop.f32.mrb[0].mxu0
    %510 = vmatprep.mubr.f32.mxu0 0.0
    %511 = vmatmul.mubr.f32.gmra.mrb[0].mxu0 %v378
    %v512 = vpop.f32.mrb[0].mxu0
    %v513 = vadd.f32 0.0, %v512
    %v514 = vpop.f32.mrb[0].mxu0
    %515 = vmatprep.mubr.f32.mxu0 0.0
    %516 = vmatmul.mubr.f32.gmra.mrb[0].mxu0 %v379
    %v517 = vpop.f32.mrb[0].mxu0
    %v518 = vadd.f32 0.0, %v517
    %v519 = vpop.f32.mrb[0].mxu0
    %520 = vmatprep.mubr.f32.mxu0 0.0
    %521 = vmatmul.mubr.f32.gmra.mrb[0].mxu0 %v380
    %v522 = vpop.f32.mrb[0].mxu0
    %v523 = vadd.f32 0.0, %v522
    %v524 = vpop.f32.mrb[0].mxu0
    %525 = vdwg.mxu0
    %526 = vst [vmem:[#allocation2] sm:$0xff] %v448
    %527 = vst [vmem:[#allocation2 + $0x8] sm:$0xff] %v453
    %528 = vst [vmem:[#allocation2 + $0x10] sm:$0xff] %v458
    %529 = vst [vmem:[#allocation2 + $0x18] sm:$0xff] %v463
    %530 = vst [vmem:[#allocation2 + $0x20] sm:$0xff] %v468
    %531 = vst [vmem:[#allocation2 + $0x28] sm:$0xff] %v473
    %532 = vst [vmem:[#allocation2 + $0x30] sm:$0xff] %v478
    %533 = vst [vmem:[#allocation2 + $0x38] sm:$0xff] %v483
    %534 = vst [vmem:[#allocation2 + $0x40] sm:$0xff] %v488
    %535 = vst [vmem:[#allocation2 + $0x48] sm:$0xff] %v493
    %536 = vst [vmem:[#allocation2 + $0x50] sm:$0xff] %v498
    %537 = vst [vmem:[#allocation2 + $0x58] sm:$0xff] %v503
    %538 = vst [vmem:[#allocation2 + $0x60] sm:$0xff] %v508
    %539 = vst [vmem:[#allocation2 + $0x68] sm:$0xff] %v513
    %540 = vst [vmem:[#allocation2 + $0x70] sm:$0xff] %v518
    %541 = vst [vmem:[#allocation2 + $0x78] sm:$0xff] %v523
    // Predicated region
    $region18: #{tpu_custom_call.1} parent=1 // pred_check
      _
    $region19: #{tpu_custom_call.1} parent=1 // pred_check_branch
      %543 = sbr.rel (0) target = $region21
    $region20: #{tpu_custom_call.1} parent=1 // pred_region
      %s545 = ssub.s32 2048, 2048
      %546 = vsyncadd [#allocation3], %s545
      %s547 = sshll.u32 [#allocation2], 4
      %s548 = int_to_ptr.vmem [resolvable:$true] %s547
      %553 = dma.vmem_to_hbm [thread:$0]  %s548, 2048, %s4, [#allocation3], 128, 128, 8
    $region21: #{tpu_custom_call.1} parent=1 // pred_fallthru
      _
    // Predicated region
    $region22: #{tpu_custom_call.1} parent=1 // pred_check
      _
    $region23: #{tpu_custom_call.1} parent=1 // pred_check_branch
      %555 = sbr.rel (0) target = $region25
    $region24: #{tpu_custom_call.1} parent=1 // pred_region
      %556 = dma.done [#allocation3], 2048
    $region25: #{tpu_custom_call.1} parent=1 // pred_fallthru
      _
    %557 = vsyncpa [#allocation3], 1

</llo_original>
